<compile_context>
chip_gen: v6e
topology: v6e:2x2x1
jax: 0.10.0
libtpu: 0.0.40
codegen_flags: <defaults>
</compile_context>

<pallas_src>
import functools

import jax
import jax.numpy as jnp
from jax import lax
from jax.experimental import pallas as pl
from jax.experimental.pallas import tpu as pltpu


# ----------------------------------------------------------------------------
# Pallas kernel: direct 3x3 complex conv for one batch element.
# ----------------------------------------------------------------------------
def _complex_conv_kernel(x_ref, w_ref, b_ref, o_ref, *, kh, kw, wp):
    """x_ref: (1, 2Cin, Hp*Wp + kw-1) bf16   channel-stacked, padded, flattened
       w_ref: (kh*kw, 2Cout, 2Cin)    bf16   per-tap complex block weights
       b_ref: (2Cout, 1)              f32    precombined bias
       o_ref: (1, 2Cout, H*Wp)        f32    padded-width flat output
    """
    p_out = o_ref.shape[-1]                      # H * Wp
    acc = jnp.zeros(o_ref.shape[1:], dtype=jnp.float32)   # (2Cout, H*Wp)
    for ki in range(kh):
        for kj in range(kw):
            kk = ki * kw + kj
            off = ki * wp + kj                   # static lane offset of this tap
            x_tap = x_ref[0, :, off:off + p_out]            # (2Cin, H*Wp) bf16
            acc = acc + jnp.dot(w_ref[kk], x_tap,
                                preferred_element_type=jnp.float32)
    o_ref[0] = acc + b_ref[...]                  # single bias add, f32 store


# ----------------------------------------------------------------------------
# Wrapper: weight/bias block prep (tiny), padding/flatten glue, pallas_call.
# ----------------------------------------------------------------------------
def complex_conv2d_wrapper(x_re, x_im, w_re, w_im, b_re, b_im):
    """ComplexMultiplicationWrapper(nn.Conv2d, Cin, Cout, 3, padding=1).

    x_re, x_im : [N, Cin, H, W] float32     (real / imag parts of the input)
    w_re, w_im : [Cout, Cin, KH, KW] float32 (the two non-shared Conv2d weights)
    b_re, b_im : [Cout] float32
    returns    : complex64 [N, Cout, H, W]
    """
    N, cin, H, W = x_re.shape
    cout, _, KH, KW = w_re.shape
    ph, pw = (KH - 1) // 2, (KW - 1) // 2        # 'same' padding
    Hp, Wp = H + 2 * ph, W + 2 * pw
    P = H * Wp                                   # padded-width flat output length

    # ---- activations: stack re/im channels, pad, flatten, bf16 (1x traffic) ----
    x = jnp.concatenate([x_re.astype(jnp.bfloat16),
                         x_im.astype(jnp.bfloat16)], axis=1)        # [N, 2Cin, H, W]
    x = jnp.pad(x, ((0, 0), (0, 0), (ph, ph), (pw, pw)))            # [N, 2Cin, Hp, Wp]
    x = x.reshape(N, 2 * cin, Hp * Wp)
    x = jnp.pad(x, ((0, 0), (0, 0), (0, KW - 1)))                   # room for last tap's slice

    # ---- complex block weights per tap: [[wr, -wi], [wi, wr]]  ------------------
    w_top = jnp.concatenate([w_re, -w_im], axis=1)                  # [Cout, 2Cin, KH, KW]
    w_bot = jnp.concatenate([w_im,  w_re], axis=1)                  # [Cout, 2Cin, KH, KW]
    w_blk = jnp.concatenate([w_top, w_bot], axis=0)                 # [2Cout, 2Cin, KH, KW]
    w_blk = jnp.transpose(w_blk, (2, 3, 0, 1)).reshape(KH * KW, 2 * cout, 2 * cin)
    w_blk = w_blk.astype(jnp.bfloat16)

    # ---- precombined bias: [br - bi ; br + bi] ----------------------------------
    b_blk = jnp.concatenate([b_re - b_im, b_re + b_im]).reshape(2 * cout, 1)
    b_blk = b_blk.astype(jnp.float32)

    kernel = functools.partial(_complex_conv_kernel, kh=KH, kw=KW, wp=Wp)

    # TODO(synk): for large H*W (padded image > VMEM) tile output rows with a
    # halo via manual DMA (memory_space=pl.ANY + pltpu.make_async_copy).
    out_flat = pl.pallas_call(
        kernel,
        out_shape=jax.ShapeDtypeStruct((N, 2 * cout, P), jnp.float32),
        grid_spec=pltpu.PrefetchScalarGridSpec(
            num_scalar_prefetch=0,
            grid=(N,),
            in_specs=[
                pl.BlockSpec((1, 2 * cin, x.shape[-1]), lambda n: (n, 0, 0)),   # activations
                pl.BlockSpec((KH * KW, 2 * cout, 2 * cin), lambda n: (0, 0, 0)),  # weights (resident)
                pl.BlockSpec((2 * cout, 1), lambda n: (0, 0)),                    # bias (resident)
            ],
            out_specs=pl.BlockSpec((1, 2 * cout, P), lambda n: (n, 0, 0)),
        ),
        compiler_params=pltpu.CompilerParams(
            dimension_semantics=("parallel",)),
    )(x, w_blk, b_blk)

    # [N, 2Cout, H, Wp] -> drop the pw*2 padded-width junk columns -> split re/im.
    out = out_flat.reshape(N, 2 * cout, H, Wp)[:, :, :, :W]
    return lax.complex(out[:, :cout], out[:, cout:])


# ----------------------------------------------------------------------------
# Pure-JAX reference (lax conv) used only for a correctness check.
# ----------------------------------------------------------------------------
def _conv_ref(x, w, b):
    y = lax.conv_general_dilated(
        x, w, window_strides=(1, 1), padding="SAME",
        dimension_numbers=("NCHW", "OIHW", "NCHW"))
    return y + b.reshape(1, -1, 1, 1)


def _reference(x_re, x_im, w_re, w_im, b_re, b_im):
    out_re = _conv_ref(x_re, w_re, b_re) - _conv_ref(x_im, w_im, b_im)
    out_im = _conv_ref(x_im, w_re, b_re) + _conv_ref(x_re, w_im, b_im)
    return lax.complex(out_re, out_im)


if __name__ == "__main__":
    N, Cin, Cout, H, W = 2, 4, 4, 16, 16
    KH = KW = 3

    key = jax.random.PRNGKey(0)
    k_xr, k_xi, k_wr, k_wi, k_br, k_bi = jax.random.split(key, 6)

    x_re = jax.random.normal(k_xr, (N, Cin, H, W), jnp.float32)
    x_im = jax.random.normal(k_xi, (N, Cin, H, W), jnp.float32)

    # Deterministic init mimicking nn.Conv2d defaults: U(-1/sqrt(fan_in), +)
    fan_in = Cin * KH * KW
    bound = 1.0 / (fan_in ** 0.5)
    w_re = jax.random.uniform(k_wr, (Cout, Cin, KH, KW), jnp.float32, -bound, bound)
    w_im = jax.random.uniform(k_wi, (Cout, Cin, KH, KW), jnp.float32, -bound, bound)
    b_re = jax.random.uniform(k_br, (Cout,), jnp.float32, -bound, bound)
    b_im = jax.random.uniform(k_bi, (Cout,), jnp.float32, -bound, bound)

    # Pre-round activations/weights to bf16 so the f32 reference and the
    # bf16-MXU kernel see identical operand values (products are then exact
    # in f32; only accumulation order differs -> tight tolerances hold).
    rb = lambda a: a.astype(jnp.bfloat16).astype(jnp.float32)
    x_re, x_im, w_re, w_im = map(rb, (x_re, x_im, w_re, w_im))

    fwd = jax.jit(complex_conv2d_wrapper)
    out = jax.block_until_ready(fwd(x_re, x_im, w_re, w_im, b_re, b_im))

    ref = _reference(x_re, x_im, w_re, w_im, b_re, b_im)
    assert out.shape == (N, Cout, H, W) and out.dtype == jnp.complex64
    assert jnp.allclose(out.real, ref.real, atol=1e-3, rtol=1e-3)
    assert jnp.allclose(out.imag, ref.imag, atol=1e-3, rtol=1e-3)

    print("KERNEL_OK")
</pallas_src>

<mosaic_0001>
module attributes {stable_mosaic.version = 11 : i64} {
  func.func @_complex_conv_kernel(%arg0: i32, %arg1: memref<1x8x326xbf16, #tpu.memory_space<vmem>>, %arg2: memref<9x8x8xbf16, #tpu.memory_space<vmem>>, %arg3: memref<8x1xf32, #tpu.memory_space<vmem>>, %arg4: memref<1x8x288xf32, #tpu.memory_space<vmem>>) attributes {dimension_semantics = [#tpu.dimension_semantics<parallel>], iteration_bounds = array<i64: 2>, scalar_prefetch = 0 : i64, scratch_operands = 0 : i64, tpu.core_type = #tpu.core_type<tc>, window_params = [{transform_indices = @transform_0, window_bounds = array<i64: 1, 8, 326>}, {pipeline_mode = #tpu.pipeline_mode<synchronous>, transform_indices = @transform_1, window_bounds = array<i64: 9, 8, 8>}, {pipeline_mode = #tpu.pipeline_mode<synchronous>, transform_indices = @transform_2, window_bounds = array<i64: 8, 1>}, {transform_indices = @transform_3, window_bounds = array<i64: 1, 8, 288>}]} {
    %cst = arith.constant 0.000000e+00 : f32
    %0 = vector.broadcast %cst : f32 to vector<8x288xf32>
    %c0 = arith.constant 0 : index
    %c0_0 = arith.constant 0 : index
    %c0_1 = arith.constant 0 : index
    %1 = vector.load %arg1[%c0, %c0_0, %c0_1] : memref<1x8x326xbf16, #tpu.memory_space<vmem>>, vector<1x8x288xbf16>
    %2 = vector.shape_cast %1 : vector<1x8x288xbf16> to vector<8x288xbf16>
    %c0_2 = arith.constant 0 : index
    %c0_3 = arith.constant 0 : index
    %c0_4 = arith.constant 0 : index
    %3 = vector.load %arg2[%c0_2, %c0_3, %c0_4] : memref<9x8x8xbf16, #tpu.memory_space<vmem>>, vector<1x8x8xbf16>
    %4 = vector.shape_cast %3 : vector<1x8x8xbf16> to vector<8x8xbf16>
    %cst_5 = arith.constant dense<0.000000e+00> : vector<8x288xf32>
    %5 = tpu.matmul %4, %2, %cst_5 {dimension_numbers = #tpu.dot_dimension_numbers<[1], [0], [0], [1], [0, 0, 1, 1], [], []>} : vector<8x8xbf16>, vector<8x288xbf16>, vector<8x288xf32> -> vector<8x288xf32>
    %6 = arith.addf %0, %5 : vector<8x288xf32>
    %c0_6 = arith.constant 0 : index
    %c0_7 = arith.constant 0 : index
    %c1 = arith.constant 1 : index
    %7 = vector.load %arg1[%c0_6, %c0_7, %c1] : memref<1x8x326xbf16, #tpu.memory_space<vmem>>, vector<1x8x288xbf16>
    %8 = vector.shape_cast %7 : vector<1x8x288xbf16> to vector<8x288xbf16>
    %c1_8 = arith.constant 1 : index
    %c0_9 = arith.constant 0 : index
    %c0_10 = arith.constant 0 : index
    %9 = vector.load %arg2[%c1_8, %c0_9, %c0_10] : memref<9x8x8xbf16, #tpu.memory_space<vmem>>, vector<1x8x8xbf16>
    %10 = vector.shape_cast %9 : vector<1x8x8xbf16> to vector<8x8xbf16>
    %cst_11 = arith.constant dense<0.000000e+00> : vector<8x288xf32>
    %11 = tpu.matmul %10, %8, %cst_11 {dimension_numbers = #tpu.dot_dimension_numbers<[1], [0], [0], [1], [0, 0, 1, 1], [], []>} : vector<8x8xbf16>, vector<8x288xbf16>, vector<8x288xf32> -> vector<8x288xf32>
    %12 = arith.addf %6, %11 : vector<8x288xf32>
    %c0_12 = arith.constant 0 : index
    %c0_13 = arith.constant 0 : index
    %c2 = arith.constant 2 : index
    %13 = vector.load %arg1[%c0_12, %c0_13, %c2] : memref<1x8x326xbf16, #tpu.memory_space<vmem>>, vector<1x8x288xbf16>
    %14 = vector.shape_cast %13 : vector<1x8x288xbf16> to vector<8x288xbf16>
    %c2_14 = arith.constant 2 : index
    %c0_15 = arith.constant 0 : index
    %c0_16 = arith.constant 0 : index
    %15 = vector.load %arg2[%c2_14, %c0_15, %c0_16] : memref<9x8x8xbf16, #tpu.memory_space<vmem>>, vector<1x8x8xbf16>
    %16 = vector.shape_cast %15 : vector<1x8x8xbf16> to vector<8x8xbf16>
    %cst_17 = arith.constant dense<0.000000e+00> : vector<8x288xf32>
    %17 = tpu.matmul %16, %14, %cst_17 {dimension_numbers = #tpu.dot_dimension_numbers<[1], [0], [0], [1], [0, 0, 1, 1], [], []>} : vector<8x8xbf16>, vector<8x288xbf16>, vector<8x288xf32> -> vector<8x288xf32>
    %18 = arith.addf %12, %17 : vector<8x288xf32>
    %c0_18 = arith.constant 0 : index
    %c0_19 = arith.constant 0 : index
    %c18 = arith.constant 18 : index
    %19 = vector.load %arg1[%c0_18, %c0_19, %c18] : memref<1x8x326xbf16, #tpu.memory_space<vmem>>, vector<1x8x288xbf16>
    %20 = vector.shape_cast %19 : vector<1x8x288xbf16> to vector<8x288xbf16>
    %c3 = arith.constant 3 : index
    %c0_20 = arith.constant 0 : index
    %c0_21 = arith.constant 0 : index
    %21 = vector.load %arg2[%c3, %c0_20, %c0_21] : memref<9x8x8xbf16, #tpu.memory_space<vmem>>, vector<1x8x8xbf16>
    %22 = vector.shape_cast %21 : vector<1x8x8xbf16> to vector<8x8xbf16>
    %cst_22 = arith.constant dense<0.000000e+00> : vector<8x288xf32>
    %23 = tpu.matmul %22, %20, %cst_22 {dimension_numbers = #tpu.dot_dimension_numbers<[1], [0], [0], [1], [0, 0, 1, 1], [], []>} : vector<8x8xbf16>, vector<8x288xbf16>, vector<8x288xf32> -> vector<8x288xf32>
    %24 = arith.addf %18, %23 : vector<8x288xf32>
    %c0_23 = arith.constant 0 : index
    %c0_24 = arith.constant 0 : index
    %c19 = arith.constant 19 : index
    %25 = vector.load %arg1[%c0_23, %c0_24, %c19] : memref<1x8x326xbf16, #tpu.memory_space<vmem>>, vector<1x8x288xbf16>
    %26 = vector.shape_cast %25 : vector<1x8x288xbf16> to vector<8x288xbf16>
    %c4 = arith.constant 4 : index
    %c0_25 = arith.constant 0 : index
    %c0_26 = arith.constant 0 : index
    %27 = vector.load %arg2[%c4, %c0_25, %c0_26] : memref<9x8x8xbf16, #tpu.memory_space<vmem>>, vector<1x8x8xbf16>
    %28 = vector.shape_cast %27 : vector<1x8x8xbf16> to vector<8x8xbf16>
    %cst_27 = arith.constant dense<0.000000e+00> : vector<8x288xf32>
    %29 = tpu.matmul %28, %26, %cst_27 {dimension_numbers = #tpu.dot_dimension_numbers<[1], [0], [0], [1], [0, 0, 1, 1], [], []>} : vector<8x8xbf16>, vector<8x288xbf16>, vector<8x288xf32> -> vector<8x288xf32>
    %30 = arith.addf %24, %29 : vector<8x288xf32>
    %c0_28 = arith.constant 0 : index
    %c0_29 = arith.constant 0 : index
    %c20 = arith.constant 20 : index
    %31 = vector.load %arg1[%c0_28, %c0_29, %c20] : memref<1x8x326xbf16, #tpu.memory_space<vmem>>, vector<1x8x288xbf16>
    %32 = vector.shape_cast %31 : vector<1x8x288xbf16> to vector<8x288xbf16>
    %c5 = arith.constant 5 : index
    %c0_30 = arith.constant 0 : index
    %c0_31 = arith.constant 0 : index
    %33 = vector.load %arg2[%c5, %c0_30, %c0_31] : memref<9x8x8xbf16, #tpu.memory_space<vmem>>, vector<1x8x8xbf16>
    %34 = vector.shape_cast %33 : vector<1x8x8xbf16> to vector<8x8xbf16>
    %cst_32 = arith.constant dense<0.000000e+00> : vector<8x288xf32>
    %35 = tpu.matmul %34, %32, %cst_32 {dimension_numbers = #tpu.dot_dimension_numbers<[1], [0], [0], [1], [0, 0, 1, 1], [], []>} : vector<8x8xbf16>, vector<8x288xbf16>, vector<8x288xf32> -> vector<8x288xf32>
    %36 = arith.addf %30, %35 : vector<8x288xf32>
    %c0_33 = arith.constant 0 : index
    %c0_34 = arith.constant 0 : index
    %c36 = arith.constant 36 : index
    %37 = vector.load %arg1[%c0_33, %c0_34, %c36] : memref<1x8x326xbf16, #tpu.memory_space<vmem>>, vector<1x8x288xbf16>
    %38 = vector.shape_cast %37 : vector<1x8x288xbf16> to vector<8x288xbf16>
    %c6 = arith.constant 6 : index
    %c0_35 = arith.constant 0 : index
    %c0_36 = arith.constant 0 : index
    %39 = vector.load %arg2[%c6, %c0_35, %c0_36] : memref<9x8x8xbf16, #tpu.memory_space<vmem>>, vector<1x8x8xbf16>
    %40 = vector.shape_cast %39 : vector<1x8x8xbf16> to vector<8x8xbf16>
    %cst_37 = arith.constant dense<0.000000e+00> : vector<8x288xf32>
    %41 = tpu.matmul %40, %38, %cst_37 {dimension_numbers = #tpu.dot_dimension_numbers<[1], [0], [0], [1], [0, 0, 1, 1], [], []>} : vector<8x8xbf16>, vector<8x288xbf16>, vector<8x288xf32> -> vector<8x288xf32>
    %42 = arith.addf %36, %41 : vector<8x288xf32>
    %c0_38 = arith.constant 0 : index
    %c0_39 = arith.constant 0 : index
    %c37 = arith.constant 37 : index
    %43 = vector.load %arg1[%c0_38, %c0_39, %c37] : memref<1x8x326xbf16, #tpu.memory_space<vmem>>, vector<1x8x288xbf16>
    %44 = vector.shape_cast %43 : vector<1x8x288xbf16> to vector<8x288xbf16>
    %c7 = arith.constant 7 : index
    %c0_40 = arith.constant 0 : index
    %c0_41 = arith.constant 0 : index
    %45 = vector.load %arg2[%c7, %c0_40, %c0_41] : memref<9x8x8xbf16, #tpu.memory_space<vmem>>, vector<1x8x8xbf16>
    %46 = vector.shape_cast %45 : vector<1x8x8xbf16> to vector<8x8xbf16>
    %cst_42 = arith.constant dense<0.000000e+00> : vector<8x288xf32>
    %47 = tpu.matmul %46, %44, %cst_42 {dimension_numbers = #tpu.dot_dimension_numbers<[1], [0], [0], [1], [0, 0, 1, 1], [], []>} : vector<8x8xbf16>, vector<8x288xbf16>, vector<8x288xf32> -> vector<8x288xf32>
    %48 = arith.addf %42, %47 : vector<8x288xf32>
    %c0_43 = arith.constant 0 : index
    %c0_44 = arith.constant 0 : index
    %c38 = arith.constant 38 : index
    %49 = vector.load %arg1[%c0_43, %c0_44, %c38] : memref<1x8x326xbf16, #tpu.memory_space<vmem>>, vector<1x8x288xbf16>
    %50 = vector.shape_cast %49 : vector<1x8x288xbf16> to vector<8x288xbf16>
    %c8 = arith.constant 8 : index
    %c0_45 = arith.constant 0 : index
    %c0_46 = arith.constant 0 : index
    %51 = vector.load %arg2[%c8, %c0_45, %c0_46] : memref<9x8x8xbf16, #tpu.memory_space<vmem>>, vector<1x8x8xbf16>
    %52 = vector.shape_cast %51 : vector<1x8x8xbf16> to vector<8x8xbf16>
    %cst_47 = arith.constant dense<0.000000e+00> : vector<8x288xf32>
    %53 = tpu.matmul %52, %50, %cst_47 {dimension_numbers = #tpu.dot_dimension_numbers<[1], [0], [0], [1], [0, 0, 1, 1], [], []>} : vector<8x8xbf16>, vector<8x288xbf16>, vector<8x288xf32> -> vector<8x288xf32>
    %54 = arith.addf %48, %53 : vector<8x288xf32>
    %c0_48 = arith.constant 0 : index
    %c0_49 = arith.constant 0 : index
    %55 = vector.load %arg3[%c0_48, %c0_49] : memref<8x1xf32, #tpu.memory_space<vmem>>, vector<8x1xf32>
    %56 = vector.broadcast %55 : vector<8x1xf32> to vector<8x288xf32>
    %57 = arith.addf %54, %56 : vector<8x288xf32>
    %c0_50 = arith.constant 0 : index
    %c0_51 = arith.constant 0 : index
    %c0_52 = arith.constant 0 : index
    %58 = vector.load %arg4[%c0_50, %c0_51, %c0_52] : memref<1x8x288xf32, #tpu.memory_space<vmem>>, vector<1x8x288xf32>
    %59 = vector.shape_cast %58 : vector<1x8x288xf32> to vector<8x288xf32>
    %60 = vector.shape_cast %57 : vector<8x288xf32> to vector<1x8x288xf32>
    tpu.vector_store %arg4[%c0_50, %c0_51, %c0_52], %60 {strides = array<i32>} : memref<1x8x288xf32, #tpu.memory_space<vmem>>, vector<1x8x288xf32>,
    return
  }
  func.func @transform_0(%arg0: i32) -> (i32, i32, i32) {
    %c0_i32 = arith.constant 0 : i32
    %c0_i32_0 = arith.constant 0 : i32
    %c0_i32_1 = arith.constant 0 : i32
    return %arg0, %c0_i32, %c0_i32_0 : i32, i32, i32
  }
  func.func @transform_1(%arg0: i32) -> (i32, i32, i32) {
    %c0_i32 = arith.constant 0 : i32
    %c0_i32_0 = arith.constant 0 : i32
    %c0_i32_1 = arith.constant 0 : i32
    %c0_i32_2 = arith.constant 0 : i32
    return %c0_i32, %c0_i32_0, %c0_i32_1 : i32, i32, i32
  }
  func.func @transform_2(%arg0: i32) -> (i32, i32) {
    %c0_i32 = arith.constant 0 : i32
    %c0_i32_0 = arith.constant 0 : i32
    %c0_i32_1 = arith.constant 0 : i32
    return %c0_i32, %c0_i32_0 : i32, i32
  }
  func.func @transform_3(%arg0: i32) -> (i32, i32, i32) {
    %c0_i32 = arith.constant 0 : i32
    %c0_i32_0 = arith.constant 0 : i32
    %c0_i32_1 = arith.constant 0 : i32
    return %arg0, %c0_i32, %c0_i32_0 : i32, i32, i32
  }
}

</mosaic_0001>

<llo_original>
// kernel: custom-call
$region0: #{custom-call}
  %s0 = inlined_call_operand.vmem [shape: f32[2,4,16,16], index: 0, kind: input, shape index: {}]
  %s1 = inlined_call_operand.vmem [shape: f32[2,4,16,16], index: 1, kind: input, shape index: {}]
  %s2 = inlined_call_operand.hbm [shape: c64[2,4,16,16], index: 2, kind: output, shape index: {}]
  %s3 = scalar_lea.hbm %s2, 2048
  $region1: #{custom-call} parent=0
    #allocation0 [shape = 's32[1]{0}', space=sflag, size = 0x4, scoped, tag = 'scoped memory for custom-call']
    %4 = vsyncpa [#allocation0], 0
    %s5 = sshll.u32 %s0, 4
    %s6 = int_to_ptr.vmem [resolvable:$true] %s5
    %8 = dma.vmem_to_hbm [thread:$0]  %s6, 2048, %s2, [#allocation0]
    %9 = dma.done [#allocation0], 2048
    %10 = vsyncpa [#allocation0], 1
  $region2: #{custom-call} parent=0
    #allocation1 [shape = 's32[1]{0}', space=sflag, size = 0x4, scoped, tag = 'scoped memory for custom-call']
    %11 = vsyncpa [#allocation1], 0
    %s12 = sshll.u32 %s1, 4
    %s13 = int_to_ptr.vmem [resolvable:$true] %s12
    %15 = dma.vmem_to_hbm [thread:$0]  %s13, 2048, %s3, [#allocation1]
    %16 = dma.done [#allocation1], 2048
    %17 = vsyncpa [#allocation1], 1

// kernel: complex_conv2d_wrapper.1
$region0: #{complex_conv2d_wrapper.1}
  #allocation0 [shape = 'u32[]', space=smem, size = 0x4, offset = 0x4, fixed_abs, tag = 'smem constant byte address 0x4 - core index']
  #allocation1 [shape = 'u32[144,128]{1,0:T(1,128)}', space=vmem, size = 0x12000, scoped, tag = 'internal scratch']
  %s0 = inlined_call_operand.vmem [shape: bf16[2,8,326], index: 0, kind: input, shape index: {}]
  %s1 = inlined_call_operand.vmem [shape: bf16[9,8,8], index: 1, kind: input, shape index: {}]
  %s2 = inlined_call_operand.vmem [shape: f32[8,1], index: 2, kind: input, shape index: {}]
  %s3 = inlined_call_operand.vmem [shape: f32[2,8,288], index: 3, kind: output, shape index: {}]
  %s4 = sld [smem:[#allocation0]]
  $region45: #{complex_conv2d_wrapper.1} parent=0
    _
  %s6 = ssub.s32 1, %s4
  %s7 = scalar_select 0, %s6, %s4
  loop: start=0, step=1, limit=4
  $region2: #{complex_conv2d_wrapper.1} parent=0 // loop_pre_header
    _
  $region3: #{complex_conv2d_wrapper.1} parent=0 // loop_header
    %s9 = sphi 0, %s13
    %p10 = scmp.ge.s32.totalorder %s9, 4
    %s19 = sphi 0, %s21
    %s22 = sphi 0, %s19
    %s23 = sphi 0, %s22
    %s39 = sphi 0, %s23
    %s43 = sphi 0, %s43
    %s45 = sphi 0, %s43
    %s46 = sphi 0, %s45
    %s60 = sphi 0, %s46
    %s64 = sphi 0, %s64
    %s66 = sphi 0, %s64
    %s67 = sphi 0, %s66
    %s81 = sphi 0, %s67
    %s87 = sphi 0, %s89
    %s90 = sphi 0, %s87
    %s91 = sphi 0, %s90
    %s107 = sphi 0, %s91
  $region4: #{complex_conv2d_wrapper.1} parent=0 // loop_header_branch
    %12 = sbr.rel (%p10) target = $region8
  $region5: #{complex_conv2d_wrapper.1} parent=0 // loop_body
    %s14 = ssub.s32 %s9, 1
    %s15 = ssub.s32 %s9, 2
    %s16 = sadd.s32 %s9, 1
    %s17 = ssub.s32 %s9, %s16
    %p18 = scmp.eq.s32.totalorder %s17, 0
    %s20 = sadd.s32 %s19, 1
    %s21 = scalar_select %p18, %s19, %s20
    %p24 = pneg %p18
    %p25 = scmp.eq.s32.totalorder %s9, 1
    %p26 = por %p24, %p25
    %p27 = scmp.ne.s32.totalorder %s19, %s22
    %p28 = scmp.eq.s32.totalorder %s9, 0
    %p29 = por %p27, %p28
    %p30 = scmp.ne.s32.totalorder %s19, %s22
    %p31 = scmp.eq.s32.totalorder %s14, 1
    %p32 = por %p30, %p31
    %p33 = scmp.ne.s32.totalorder %s22, %s23
    %p34 = scmp.eq.s32.totalorder %s14, 0
    %p35 = por %p33, %p34
    %p36 = scmp.ne.s32.totalorder %s22, %s23
    %p37 = scmp.eq.s32.totalorder %s15, 1
    %p38 = por %p36, %p37
    %p40 = scmp.ne.s32.totalorder %s23, %s39
    %p41 = scmp.eq.s32.totalorder %s15, 0
    %p42 = por %p40, %p41
    %s44 = sadd.s32 %s43, 1
    %p47 = scmp.eq.s32.totalorder %s9, 1
    %p48 = scmp.ne.s32.totalorder %s43, %s45
    %p49 = scmp.eq.s32.totalorder %s9, 0
    %p50 = por %p48, %p49
    %p51 = scmp.ne.s32.totalorder %s43, %s45
    %p52 = scmp.eq.s32.totalorder %s14, 1
    %p53 = por %p51, %p52
    %p54 = scmp.ne.s32.totalorder %s45, %s46
    %p55 = scmp.eq.s32.totalorder %s14, 0
    %p56 = por %p54, %p55
    %p57 = scmp.ne.s32.totalorder %s45, %s46
    %p58 = scmp.eq.s32.totalorder %s15, 1
    %p59 = por %p57, %p58
    %p61 = scmp.ne.s32.totalorder %s46, %s60
    %p62 = scmp.eq.s32.totalorder %s15, 0
    %p63 = por %p61, %p62
    %s65 = sadd.s32 %s64, 1
    %p68 = scmp.eq.s32.totalorder %s9, 1
    %p69 = scmp.ne.s32.totalorder %s64, %s66
    %p70 = scmp.eq.s32.totalorder %s9, 0
    %p71 = por %p69, %p70
    %p72 = scmp.ne.s32.totalorder %s64, %s66
    %p73 = scmp.eq.s32.totalorder %s14, 1
    %p74 = por %p72, %p73
    %p75 = scmp.ne.s32.totalorder %s66, %s67
    %p76 = scmp.eq.s32.totalorder %s14, 0
    %p77 = por %p75, %p76
    %p78 = scmp.ne.s32.totalorder %s66, %s67
    %p79 = scmp.eq.s32.totalorder %s15, 1
    %p80 = por %p78, %p79
    %p82 = scmp.ne.s32.totalorder %s67, %s81
    %p83 = scmp.eq.s32.totalorder %s15, 0
    %p84 = por %p82, %p83
    %s85 = ssub.s32 %s9, %s16
    %p86 = scmp.eq.s32.totalorder %s85, 0
    %s88 = sadd.s32 %s87, 1
    %s89 = scalar_select %p86, %s87, %s88
    %p92 = pneg %p86
    %p93 = scmp.eq.s32.totalorder %s9, 1
    %p94 = por %p92, %p93
    %p95 = scmp.ne.s32.totalorder %s87, %s90
    %p96 = scmp.eq.s32.totalorder %s9, 0
    %p97 = por %p95, %p96
    %p98 = scmp.ne.s32.totalorder %s87, %s90
    %p99 = scmp.eq.s32.totalorder %s14, 1
    %p100 = por %p98, %p99
    %p101 = scmp.ne.s32.totalorder %s90, %s91
    %p102 = scmp.eq.s32.totalorder %s14, 0
    %p103 = por %p101, %p102
    %p104 = scmp.ne.s32.totalorder %s90, %s91
    %p105 = scmp.eq.s32.totalorder %s15, 1
    %p106 = por %p104, %p105
    %p108 = scmp.ne.s32.totalorder %s91, %s107
    %p109 = scmp.eq.s32.totalorder %s15, 0
    %p110 = por %p108, %p109
    %p111 = scmp.le.s32.totalorder 1, %s9
    %p112 = scmp.lt.s32.totalorder %s9, 3
    %p113 = pnand %p111, %p112
    %p114 = pneg %p113
    // Predicated region
    $region9: #{complex_conv2d_wrapper.1} parent=5 // pred_check
      _
    $region10: #{complex_conv2d_wrapper.1} parent=5 // pred_check_branch
      %116 = sbr.rel (%p113) target = $region12
    $region11: #{complex_conv2d_wrapper.1} parent=5 // pred_region
      %s117 = ssub.s32 %s9, 1
      // Predicated region
      $region13: #{complex_conv2d_wrapper.1} parent=11 // pred_check
        %p118 = pneg %p56
      $region14: #{complex_conv2d_wrapper.1} parent=11 // pred_check_branch
        %120 = sbr.rel (%p118) target = $region16
      $region15: #{complex_conv2d_wrapper.1} parent=11 // pred_region
        _
      $region16: #{complex_conv2d_wrapper.1} parent=11 // pred_fallthru
        _
      // Predicated region
      $region17: #{complex_conv2d_wrapper.1} parent=11 // pred_check
        %p121 = pneg %p77
      $region18: #{complex_conv2d_wrapper.1} parent=11 // pred_check_branch
        %123 = sbr.rel (%p121) target = $region20
      $region19: #{complex_conv2d_wrapper.1} parent=11 // pred_region
        _
      $region20: #{complex_conv2d_wrapper.1} parent=11 // pred_fallthru
        _
    $region12: #{complex_conv2d_wrapper.1} parent=5 // pred_fallthru
      _
    %p124 = scmp.lt.s32.totalorder %s9, 2
    // Predicated region
    $region21: #{complex_conv2d_wrapper.1} parent=5 // pred_check
      %p125 = pneg %p124
    $region22: #{complex_conv2d_wrapper.1} parent=5 // pred_check_branch
      %127 = sbr.rel (%p125) target = $region24
    $region23: #{complex_conv2d_wrapper.1} parent=5 // pred_region
      // Predicated region
      $region25: #{complex_conv2d_wrapper.1} parent=23 // pred_check
        %p128 = pneg %p29
      $region26: #{complex_conv2d_wrapper.1} parent=23 // pred_check_branch
        %130 = sbr.rel (%p128) target = $region28
      $region27: #{complex_conv2d_wrapper.1} parent=23 // pred_region
        %p131 = scmp.lt.s32.totalorder %s9, 1
        %s132 = scalar_select %p131, %s9, 1
        %s133 = smul.addr %s132, 3
        %s134 = smul.addr %s133, 4
        %s135 = scalar_lea.vmem %s0, %s134
      $region28: #{complex_conv2d_wrapper.1} parent=23 // pred_fallthru
        _
    $region24: #{complex_conv2d_wrapper.1} parent=5 // pred_fallthru
      _
    %p136 = scmp.le.s32.totalorder 1, %s9
    %p137 = scmp.lt.s32.totalorder %s9, 3
    %p138 = pnand %p136, %p137
    %p139 = pneg %p138
    // Predicated region
    $region29: #{complex_conv2d_wrapper.1} parent=5 // pred_check
      _
    $region30: #{complex_conv2d_wrapper.1} parent=5 // pred_check_branch
      %141 = sbr.rel (%p138) target = $region32
    $region31: #{complex_conv2d_wrapper.1} parent=5 // pred_region
      %s142 = ssub.s32 %s9, 1
      %p143 = scmp.lt.s32.totalorder %s14, 1
      %s144 = scalar_select %p143, %s14, 1
      %s145 = smul.addr %s144, 3
      %s146 = smul.addr %s145, 4
      %s147 = scalar_lea.vmem %s0, %s146
      %p148 = pneg %p35
      %p149 = pneg %p32
      %p150 = pneg %p56
      %p151 = pneg %p53
      %p152 = pneg %p77
      %p153 = pneg %p74
      %p154 = pneg %p103
      %p155 = pneg %p100
      %p156 = scmp.lt.s32.totalorder %s14, 1
      %s157 = scalar_select %p156, %s14, 1
      %s158 = smul.addr %s157, 3
      %s159 = smul.addr %s158, 8
      %s160 = scalar_lea.vmem %s3, %s159
      %p161 = scmp.lt.s32.totalorder %s14, 1
      %s162 = scalar_select %p161, %s14, 1
      %s163 = smul.addr %s162, 3
      %s164 = smul.addr %s163, 4
      %s165 = scalar_lea.vmem %s0, %s164
      %p166 = scmp.lt.s32.totalorder %s14, 1
      %s167 = scalar_select %p166, %s14, 1
      %s168 = smul.addr %s167, 3
      %s169 = smul.addr %s168, 8
      %s170 = scalar_lea.vmem %s3, %s169
      %v172 = vld [vmem:[%s165] sm:$0xff]
      %v173 = vld [vmem:[%s165 + $0x8] sm:$0xf]
      %v174 = vld [vmem:[%s1] sm:$0xf]
      %s175 = scalar_lea.vmem %s1, 4
      %v176 = vld [vmem:[%s175] sm:$0xf]
      %v179 = vunpack.c.l.b16 %v172
      %v180 = vunpack.c.h.b16 %v172
      %v181 = vunpack.c.l.b16 %v173
      %v182 = vpack.c.b16 %v179, %v179
      %v183 = vpack.c.b16 %v180, %v180
      %v184 = vpack.c.b16 %v181, %v181
      %185 = vrot.lane.b32.xlu0 %v182, 127
      %v186 = vpop.permute.xlu0 %185
      %187 = vrot.lane.b32.xlu0 %v183, 127
      %v188 = vpop.permute.xlu0 %187
      %189 = vrot.lane.b32.xlu0 %v184, 127
      %v190 = vpop.permute.xlu0 %189
      %vm191 = vcmask 1039360
      %v192 = vsel %vm191, %v186, %v188
      %v193 = vsel %vm191, %v188, %v190
      %vm194 = vcmask 64512
      %v196 = vsel %vm194, %v176, 0
      %vm198 = vcmask 1043456
      %v200 = vsel %vm198, %v192, 0
      %v203 = vsel %vm198, %v193, 0
      %v206 = vsel %vm198, %v190, 0
      %208 = vmatprep.subr.bf16.mxu0 0
      %209 = vmatpush1.bf16.msra.mxu0 0
      %210 = vmatprep.subr.bf16.mxu0 0
      %211 = vmatpush1.bf16.msra.mxu0 0
      %212 = vmatprep.subr.bf16.mxu0 0
      %213 = vmatpush1.bf16.msra.mxu0 0
      %214 = vmatprep.subr.bf16.mxu0 0
      %215 = vmatpush1.bf16.msra.mxu0 0
      %216 = vmatprep.subr.bf16.mxu0 0
      %217 = vmatpush1.bf16.msra.mxu0 0
      %218 = vmatprep.subr.bf16.mxu0 0
      %219 = vmatpush1.bf16.msra.mxu0 0
      %220 = vmatprep.subr.bf16.mxu0 0
      %221 = vmatpush1.bf16.msra.mxu0 0
      %222 = vmatprep.subr.bf16.mxu0 %v203
      %223 = vmatpush1.bf16.msra.mxu0 %v200
      %224 = vmatprep.subr.bf16.mxu0 0
      %225 = vmatpush2.bf16.msra.mxu0 0
      %226 = vmatprep.subr.bf16.mxu0 0
      %227 = vmatpush2.bf16.msra.mxu0 0
      %228 = vmatprep.subr.bf16.mxu0 0
      %229 = vmatpush2.bf16.msra.mxu0 0
      %230 = vmatprep.subr.bf16.mxu0 0
      %231 = vmatpush2.bf16.msra.mxu0 0
      %232 = vmatprep.subr.bf16.mxu0 0
      %233 = vmatpush2.bf16.msra.mxu0 0
      %234 = vmatprep.subr.bf16.mxu0 0
      %235 = vmatpush2.bf16.msra.mxu0 0
      %236 = vmatprep.subr.bf16.mxu0 0
      %237 = vmatpush2.bf16.msra.mxu0 0
      %238 = vmatprep.subr.bf16.mxu0 0
      %239 = vmatpush2.bf16.msra.mxu0 0
      %240 = vmatprep.mubr.bf16.mxu0 0
      %241 = vmatmul.mubr.bf16.gmra.mxu0 %v196
      %v242 = vpop.f32.mrf.mxu0
      %v243 = vadd.f32 0.0, %v242
      %v244 = vpop.f32.mrf.mxu0
      %v245 = vadd.f32 0.0, %v244
      %v246 = vpop.f32.mrf.mxu0
      %v247 = vpop.f32.mrf.mxu0
      %248 = vdwg.mxu0
      %249 = vmatprep.subr.bf16.mxu0 0
      %250 = vmatpush1.bf16.msra.mxu0 0
      %251 = vmatprep.subr.bf16.mxu0 0
      %252 = vmatpush1.bf16.msra.mxu0 0
      %253 = vmatprep.subr.bf16.mxu0 0
      %254 = vmatpush1.bf16.msra.mxu0 0
      %255 = vmatprep.subr.bf16.mxu0 0
      %256 = vmatpush1.bf16.msra.mxu0 0
      %257 = vmatprep.subr.bf16.mxu0 0
      %258 = vmatpush1.bf16.msra.mxu0 0
      %259 = vmatprep.subr.bf16.mxu0 0
      %260 = vmatpush1.bf16.msra.mxu0 0
      %261 = vmatprep.subr.bf16.mxu0 0
      %262 = vmatpush1.bf16.msra.mxu0 0
      %263 = vmatprep.subr.bf16.mxu0 0
      %264 = vmatpush1.bf16.msra.mxu0 %v206
      %265 = vmatprep.subr.bf16.mxu0 0
      %266 = vmatpush2.bf16.msra.mxu0 0
      %267 = vmatprep.subr.bf16.mxu0 0
      %268 = vmatpush2.bf16.msra.mxu0 0
      %269 = vmatprep.subr.bf16.mxu0 0
      %270 = vmatpush2.bf16.msra.mxu0 0
      %271 = vmatprep.subr.bf16.mxu0 0
      %272 = vmatpush2.bf16.msra.mxu0 0
      %273 = vmatprep.subr.bf16.mxu0 0
      %274 = vmatpush2.bf16.msra.mxu0 0
      %275 = vmatprep.subr.bf16.mxu0 0
      %276 = vmatpush2.bf16.msra.mxu0 0
      %277 = vmatprep.subr.bf16.mxu0 0
      %278 = vmatpush2.bf16.msra.mxu0 0
      %279 = vmatprep.subr.bf16.mxu0 0
      %280 = vmatpush2.bf16.msra.mxu0 0
      %281 = vmatprep.mubr.bf16.mxu0 0
      %282 = vmatmul.mubr.bf16.gmra.mxu0 %v196
      %v283 = vpop.f32.mrf.mxu0
      %v284 = vadd.f32 0.0, %v283
      %v285 = vpop.f32.mrf.mxu0
      %v286 = vpop.f32.mrf.mxu0
      %v287 = vpop.f32.mrf.mxu0
      %288 = vdwg.mxu0
      %v290 = vsel %vm194, %v174, 0
      %v293 = vsel %vm198, %v182, 0
      %v296 = vsel %vm198, %v183, 0
      %v299 = vsel %vm198, %v184, 0
      %301 = vmatprep.subr.bf16.mxu0 0
      %302 = vmatpush1.bf16.msra.mxu0 0
      %303 = vmatprep.subr.bf16.mxu0 0
      %304 = vmatpush1.bf16.msra.mxu0 0
      %305 = vmatprep.subr.bf16.mxu0 0
      %306 = vmatpush1.bf16.msra.mxu0 0
      %307 = vmatprep.subr.bf16.mxu0 0
      %308 = vmatpush1.bf16.msra.mxu0 0
      %309 = vmatprep.subr.bf16.mxu0 0
      %310 = vmatpush1.bf16.msra.mxu0 0
      %311 = vmatprep.subr.bf16.mxu0 0
      %312 = vmatpush1.bf16.msra.mxu0 0
      %313 = vmatprep.subr.bf16.mxu0 0
      %314 = vmatpush1.bf16.msra.mxu0 0
      %315 = vmatprep.subr.bf16.mxu0 %v296
      %316 = vmatpush1.bf16.msra.mxu0 %v293
      %317 = vmatprep.subr.bf16.mxu0 0
      %318 = vmatpush2.bf16.msra.mxu0 0
      %319 = vmatprep.subr.bf16.mxu0 0
      %320 = vmatpush2.bf16.msra.mxu0 0
      %321 = vmatprep.subr.bf16.mxu0 0
      %322 = vmatpush2.bf16.msra.mxu0 0
      %323 = vmatprep.subr.bf16.mxu0 0
      %324 = vmatpush2.bf16.msra.mxu0 0
      %325 = vmatprep.subr.bf16.mxu0 0
      %326 = vmatpush2.bf16.msra.mxu0 0
      %327 = vmatprep.subr.bf16.mxu0 0
      %328 = vmatpush2.bf16.msra.mxu0 0
      %329 = vmatprep.subr.bf16.mxu0 0
      %330 = vmatpush2.bf16.msra.mxu0 0
      %331 = vmatprep.subr.bf16.mxu0 0
      %332 = vmatpush2.bf16.msra.mxu0 0
      %333 = vmatprep.mubr.bf16.mxu0 0
      %334 = vmatmul.mubr.bf16.gmra.mxu0 %v290
      %v335 = vpop.f32.mrf.mxu0
      %v336 = vadd.f32 %v243, %v335
      %v337 = vpop.f32.mrf.mxu0
      %v338 = vadd.f32 %v245, %v337
      %v339 = vpop.f32.mrf.mxu0
      %v340 = vpop.f32.mrf.mxu0
      %341 = vdwg.mxu0
      %342 = vmatprep.subr.bf16.mxu0 0
      %343 = vmatpush1.bf16.msra.mxu0 0
      %344 = vmatprep.subr.bf16.mxu0 0
      %345 = vmatpush1.bf16.msra.mxu0 0
      %346 = vmatprep.subr.bf16.mxu0 0
      %347 = vmatpush1.bf16.msra.mxu0 0
      %348 = vmatprep.subr.bf16.mxu0 0
      %349 = vmatpush1.bf16.msra.mxu0 0
      %350 = vmatprep.subr.bf16.mxu0 0
      %351 = vmatpush1.bf16.msra.mxu0 0
      %352 = vmatprep.subr.bf16.mxu0 0
      %353 = vmatpush1.bf16.msra.mxu0 0
      %354 = vmatprep.subr.bf16.mxu0 0
      %355 = vmatpush1.bf16.msra.mxu0 0
      %356 = vmatprep.subr.bf16.mxu0 0
      %357 = vmatpush1.bf16.msra.mxu0 %v299
      %358 = vmatprep.subr.bf16.mxu0 0
      %359 = vmatpush2.bf16.msra.mxu0 0
      %360 = vmatprep.subr.bf16.mxu0 0
      %361 = vmatpush2.bf16.msra.mxu0 0
      %362 = vmatprep.subr.bf16.mxu0 0
      %363 = vmatpush2.bf16.msra.mxu0 0
      %364 = vmatprep.subr.bf16.mxu0 0
      %365 = vmatpush2.bf16.msra.mxu0 0
      %366 = vmatprep.subr.bf16.mxu0 0
      %367 = vmatpush2.bf16.msra.mxu0 0
      %368 = vmatprep.subr.bf16.mxu0 0
      %369 = vmatpush2.bf16.msra.mxu0 0
      %370 = vmatprep.subr.bf16.mxu0 0
      %371 = vmatpush2.bf16.msra.mxu0 0
      %372 = vmatprep.subr.bf16.mxu0 0
      %373 = vmatpush2.bf16.msra.mxu0 0
      %374 = vmatprep.mubr.bf16.mxu0 0
      %375 = vmatmul.mubr.bf16.gmra.mxu0 %v290
      %v376 = vpop.f32.mrf.mxu0
      %v377 = vadd.f32 %v284, %v376
      %v378 = vpop.f32.mrf.mxu0
      %v379 = vpop.f32.mrf.mxu0
      %v380 = vpop.f32.mrf.mxu0
      %381 = vdwg.mxu0
      %s382 = scalar_lea.vmem %s1, 8
      %v383 = vld [vmem:[%s382] sm:$0xf]
      %384 = vrot.lane.b32.xlu0 %v182, 126
      %v385 = vpop.permute.xlu0 %384
      %386 = vrot.lane.b32.xlu0 %v183, 126
      %v387 = vpop.permute.xlu0 %386
      %388 = vrot.lane.b32.xlu0 %v184, 126
      %v389 = vpop.permute.xlu0 %388
      %vm390 = vcmask 1031168
      %v391 = vsel %vm390, %v385, %v387
      %v392 = vsel %vm390, %v387, %v389
      %v394 = vsel %vm194, %v383, 0
      %v397 = vsel %vm198, %v391, 0
      %v400 = vsel %vm198, %v392, 0
      %v403 = vsel %vm198, %v389, 0
      %405 = vmatprep.subr.bf16.mxu0 0
      %406 = vmatpush1.bf16.msra.mxu0 0
      %407 = vmatprep.subr.bf16.mxu0 0
      %408 = vmatpush1.bf16.msra.mxu0 0
      %409 = vmatprep.subr.bf16.mxu0 0
      %410 = vmatpush1.bf16.msra.mxu0 0
      %411 = vmatprep.subr.bf16.mxu0 0
      %412 = vmatpush1.bf16.msra.mxu0 0
      %413 = vmatprep.subr.bf16.mxu0 0
      %414 = vmatpush1.bf16.msra.mxu0 0
      %415 = vmatprep.subr.bf16.mxu0 0
      %416 = vmatpush1.bf16.msra.mxu0 0
      %417 = vmatprep.subr.bf16.mxu0 0
      %418 = vmatpush1.bf16.msra.mxu0 0
      %419 = vmatprep.subr.bf16.mxu0 %v400
      %420 = vmatpush1.bf16.msra.mxu0 %v397
      %421 = vmatprep.subr.bf16.mxu0 0
      %422 = vmatpush2.bf16.msra.mxu0 0
      %423 = vmatprep.subr.bf16.mxu0 0
      %424 = vmatpush2.bf16.msra.mxu0 0
      %425 = vmatprep.subr.bf16.mxu0 0
      %426 = vmatpush2.bf16.msra.mxu0 0
      %427 = vmatprep.subr.bf16.mxu0 0
      %428 = vmatpush2.bf16.msra.mxu0 0
      %429 = vmatprep.subr.bf16.mxu0 0
      %430 = vmatpush2.bf16.msra.mxu0 0
      %431 = vmatprep.subr.bf16.mxu0 0
      %432 = vmatpush2.bf16.msra.mxu0 0
      %433 = vmatprep.subr.bf16.mxu0 0
      %434 = vmatpush2.bf16.msra.mxu0 0
      %435 = vmatprep.subr.bf16.mxu0 0
      %436 = vmatpush2.bf16.msra.mxu0 0
      %437 = vmatprep.mubr.bf16.mxu0 0
      %438 = vmatmul.mubr.bf16.gmra.mxu0 %v394
      %v439 = vpop.f32.mrf.mxu0
      %v440 = vadd.f32 0.0, %v439
      %v441 = vpop.f32.mrf.mxu0
      %v442 = vadd.f32 0.0, %v441
      %v443 = vpop.f32.mrf.mxu0
      %v444 = vpop.f32.mrf.mxu0
      %445 = vdwg.mxu0
      %446 = vmatprep.subr.bf16.mxu0 0
      %447 = vmatpush1.bf16.msra.mxu0 0
      %448 = vmatprep.subr.bf16.mxu0 0
      %449 = vmatpush1.bf16.msra.mxu0 0
      %450 = vmatprep.subr.bf16.mxu0 0
      %451 = vmatpush1.bf16.msra.mxu0 0
      %452 = vmatprep.subr.bf16.mxu0 0
      %453 = vmatpush1.bf16.msra.mxu0 0
      %454 = vmatprep.subr.bf16.mxu0 0
      %455 = vmatpush1.bf16.msra.mxu0 0
      %456 = vmatprep.subr.bf16.mxu0 0
      %457 = vmatpush1.bf16.msra.mxu0 0
      %458 = vmatprep.subr.bf16.mxu0 0
      %459 = vmatpush1.bf16.msra.mxu0 0
      %460 = vmatprep.subr.bf16.mxu0 0
      %461 = vmatpush1.bf16.msra.mxu0 %v403
      %462 = vmatprep.subr.bf16.mxu0 0
      %463 = vmatpush2.bf16.msra.mxu0 0
      %464 = vmatprep.subr.bf16.mxu0 0
      %465 = vmatpush2.bf16.msra.mxu0 0
      %466 = vmatprep.subr.bf16.mxu0 0
      %467 = vmatpush2.bf16.msra.mxu0 0
      %468 = vmatprep.subr.bf16.mxu0 0
      %469 = vmatpush2.bf16.msra.mxu0 0
      %470 = vmatprep.subr.bf16.mxu0 0
      %471 = vmatpush2.bf16.msra.mxu0 0
      %472 = vmatprep.subr.bf16.mxu0 0
      %473 = vmatpush2.bf16.msra.mxu0 0
      %474 = vmatprep.subr.bf16.mxu0 0
      %475 = vmatpush2.bf16.msra.mxu0 0
      %476 = vmatprep.subr.bf16.mxu0 0
      %477 = vmatpush2.bf16.msra.mxu0 0
      %478 = vmatprep.mubr.bf16.mxu0 0
      %479 = vmatmul.mubr.bf16.gmra.mxu0 %v394
      %v480 = vpop.f32.mrf.mxu0
      %v481 = vadd.f32 0.0, %v480
      %v482 = vpop.f32.mrf.mxu0
      %v483 = vpop.f32.mrf.mxu0
      %v484 = vpop.f32.mrf.mxu0
      %485 = vdwg.mxu0
      %v486 = vadd.f32 %v336, %v440
      %v487 = vadd.f32 %v338, %v442
      %v488 = vadd.f32 %v377, %v481
      %s489 = scalar_lea.vmem %s1, 12
      %v490 = vld [vmem:[%s489] sm:$0xf]
      %491 = vrot.lane.b32.xlu0 %v182, 110
      %v492 = vpop.permute.xlu0 %491
      %493 = vrot.lane.b32.xlu0 %v183, 110
      %v494 = vpop.permute.xlu0 %493
      %495 = vrot.lane.b32.xlu0 %v184, 110
      %v496 = vpop.permute.xlu0 %495
      %vm497 = vcmask 900096
      %v498 = vsel %vm497, %v492, %v494
      %v499 = vsel %vm497, %v494, %v496
      %v501 = vsel %vm194, %v490, 0
      %v504 = vsel %vm198, %v498, 0
      %v507 = vsel %vm198, %v499, 0
      %v510 = vsel %vm198, %v496, 0
      %512 = vmatprep.subr.bf16.mxu0 0
      %513 = vmatpush1.bf16.msra.mxu0 0
      %514 = vmatprep.subr.bf16.mxu0 0
      %515 = vmatpush1.bf16.msra.mxu0 0
      %516 = vmatprep.subr.bf16.mxu0 0
      %517 = vmatpush1.bf16.msra.mxu0 0
      %518 = vmatprep.subr.bf16.mxu0 0
      %519 = vmatpush1.bf16.msra.mxu0 0
      %520 = vmatprep.subr.bf16.mxu0 0
      %521 = vmatpush1.bf16.msra.mxu0 0
      %522 = vmatprep.subr.bf16.mxu0 0
      %523 = vmatpush1.bf16.msra.mxu0 0
      %524 = vmatprep.subr.bf16.mxu0 0
      %525 = vmatpush1.bf16.msra.mxu0 0
      %526 = vmatprep.subr.bf16.mxu0 %v507
      %527 = vmatpush1.bf16.msra.mxu0 %v504
      %528 = vmatprep.subr.bf16.mxu0 0
      %529 = vmatpush2.bf16.msra.mxu0 0
      %530 = vmatprep.subr.bf16.mxu0 0
      %531 = vmatpush2.bf16.msra.mxu0 0
      %532 = vmatprep.subr.bf16.mxu0 0
      %533 = vmatpush2.bf16.msra.mxu0 0
      %534 = vmatprep.subr.bf16.mxu0 0
      %535 = vmatpush2.bf16.msra.mxu0 0
      %536 = vmatprep.subr.bf16.mxu0 0
      %537 = vmatpush2.bf16.msra.mxu0 0
      %538 = vmatprep.subr.bf16.mxu0 0
      %539 = vmatpush2.bf16.msra.mxu0 0
      %540 = vmatprep.subr.bf16.mxu0 0
      %541 = vmatpush2.bf16.msra.mxu0 0
      %542 = vmatprep.subr.bf16.mxu0 0
      %543 = vmatpush2.bf16.msra.mxu0 0
      %544 = vmatprep.mubr.bf16.mxu0 0
      %545 = vmatmul.mubr.bf16.gmra.mxu0 %v501
      %v546 = vpop.f32.mrf.mxu0
      %v547 = vadd.f32 0.0, %v546
      %v548 = vpop.f32.mrf.mxu0
      %v549 = vadd.f32 0.0, %v548
      %v550 = vpop.f32.mrf.mxu0
      %v551 = vpop.f32.mrf.mxu0
      %552 = vdwg.mxu0
      %553 = vmatprep.subr.bf16.mxu0 0
      %554 = vmatpush1.bf16.msra.mxu0 0
      %555 = vmatprep.subr.bf16.mxu0 0
      %556 = vmatpush1.bf16.msra.mxu0 0
      %557 = vmatprep.subr.bf16.mxu0 0
      %558 = vmatpush1.bf16.msra.mxu0 0
      %559 = vmatprep.subr.bf16.mxu0 0
      %560 = vmatpush1.bf16.msra.mxu0 0
      %561 = vmatprep.subr.bf16.mxu0 0
      %562 = vmatpush1.bf16.msra.mxu0 0
      %563 = vmatprep.subr.bf16.mxu0 0
      %564 = vmatpush1.bf16.msra.mxu0 0
      %565 = vmatprep.subr.bf16.mxu0 0
      %566 = vmatpush1.bf16.msra.mxu0 0
      %567 = vmatprep.subr.bf16.mxu0 0
      %568 = vmatpush1.bf16.msra.mxu0 %v510
      %569 = vmatprep.subr.bf16.mxu0 0
      %570 = vmatpush2.bf16.msra.mxu0 0
      %571 = vmatprep.subr.bf16.mxu0 0
      %572 = vmatpush2.bf16.msra.mxu0 0
      %573 = vmatprep.subr.bf16.mxu0 0
      %574 = vmatpush2.bf16.msra.mxu0 0
      %575 = vmatprep.subr.bf16.mxu0 0
      %576 = vmatpush2.bf16.msra.mxu0 0
      %577 = vmatprep.subr.bf16.mxu0 0
      %578 = vmatpush2.bf16.msra.mxu0 0
      %579 = vmatprep.subr.bf16.mxu0 0
      %580 = vmatpush2.bf16.msra.mxu0 0
      %581 = vmatprep.subr.bf16.mxu0 0
      %582 = vmatpush2.bf16.msra.mxu0 0
      %583 = vmatprep.subr.bf16.mxu0 0
      %584 = vmatpush2.bf16.msra.mxu0 0
      %585 = vmatprep.mubr.bf16.mxu0 0
      %586 = vmatmul.mubr.bf16.gmra.mxu0 %v501
      %v587 = vpop.f32.mrf.mxu0
      %v588 = vadd.f32 0.0, %v587
      %v589 = vpop.f32.mrf.mxu0
      %v590 = vpop.f32.mrf.mxu0
      %v591 = vpop.f32.mrf.mxu0
      %592 = vdwg.mxu0
      %v593 = vadd.f32 %v486, %v547
      %v594 = vadd.f32 %v487, %v549
      %v595 = vadd.f32 %v488, %v588
      %s596 = scalar_lea.vmem %s1, 16
      %v597 = vld [vmem:[%s596] sm:$0xf]
      %598 = vrot.lane.b32.xlu0 %v182, 109
      %v599 = vpop.permute.xlu0 %598
      %600 = vrot.lane.b32.xlu0 %v183, 109
      %v601 = vpop.permute.xlu0 %600
      %602 = vrot.lane.b32.xlu0 %v184, 109
      %v603 = vpop.permute.xlu0 %602
      %vm604 = vcmask 891904
      %v605 = vsel %vm604, %v599, %v601
      %v606 = vsel %vm604, %v601, %v603
      %v608 = vsel %vm194, %v597, 0
      %v611 = vsel %vm198, %v605, 0
      %v614 = vsel %vm198, %v606, 0
      %v617 = vsel %vm198, %v603, 0
      %619 = vmatprep.subr.bf16.mxu0 0
      %620 = vmatpush1.bf16.msra.mxu0 0
      %621 = vmatprep.subr.bf16.mxu0 0
      %622 = vmatpush1.bf16.msra.mxu0 0
      %623 = vmatprep.subr.bf16.mxu0 0
      %624 = vmatpush1.bf16.msra.mxu0 0
      %625 = vmatprep.subr.bf16.mxu0 0
      %626 = vmatpush1.bf16.msra.mxu0 0
      %627 = vmatprep.subr.bf16.mxu0 0
      %628 = vmatpush1.bf16.msra.mxu0 0
      %629 = vmatprep.subr.bf16.mxu0 0
      %630 = vmatpush1.bf16.msra.mxu0 0
      %631 = vmatprep.subr.bf16.mxu0 0
      %632 = vmatpush1.bf16.msra.mxu0 0
      %633 = vmatprep.subr.bf16.mxu0 %v614
      %634 = vmatpush1.bf16.msra.mxu0 %v611
      %635 = vmatprep.subr.bf16.mxu0 0
      %636 = vmatpush2.bf16.msra.mxu0 0
      %637 = vmatprep.subr.bf16.mxu0 0
      %638 = vmatpush2.bf16.msra.mxu0 0
      %639 = vmatprep.subr.bf16.mxu0 0
      %640 = vmatpush2.bf16.msra.mxu0 0
      %641 = vmatprep.subr.bf16.mxu0 0
      %642 = vmatpush2.bf16.msra.mxu0 0
      %643 = vmatprep.subr.bf16.mxu0 0
      %644 = vmatpush2.bf16.msra.mxu0 0
      %645 = vmatprep.subr.bf16.mxu0 0
      %646 = vmatpush2.bf16.msra.mxu0 0
      %647 = vmatprep.subr.bf16.mxu0 0
      %648 = vmatpush2.bf16.msra.mxu0 0
      %649 = vmatprep.subr.bf16.mxu0 0
      %650 = vmatpush2.bf16.msra.mxu0 0
      %651 = vmatprep.mubr.bf16.mxu0 0
      %652 = vmatmul.mubr.bf16.gmra.mxu0 %v608
      %v653 = vpop.f32.mrf.mxu0
      %v654 = vadd.f32 0.0, %v653
      %v655 = vpop.f32.mrf.mxu0
      %v656 = vadd.f32 0.0, %v655
      %v657 = vpop.f32.mrf.mxu0
      %v658 = vpop.f32.mrf.mxu0
      %659 = vdwg.mxu0
      %660 = vmatprep.subr.bf16.mxu0 0
      %661 = vmatpush1.bf16.msra.mxu0 0
      %662 = vmatprep.subr.bf16.mxu0 0
      %663 = vmatpush1.bf16.msra.mxu0 0
      %664 = vmatprep.subr.bf16.mxu0 0
      %665 = vmatpush1.bf16.msra.mxu0 0
      %666 = vmatprep.subr.bf16.mxu0 0
      %667 = vmatpush1.bf16.msra.mxu0 0
      %668 = vmatprep.subr.bf16.mxu0 0
      %669 = vmatpush1.bf16.msra.mxu0 0
      %670 = vmatprep.subr.bf16.mxu0 0
      %671 = vmatpush1.bf16.msra.mxu0 0
      %672 = vmatprep.subr.bf16.mxu0 0
      %673 = vmatpush1.bf16.msra.mxu0 0
      %674 = vmatprep.subr.bf16.mxu0 0
      %675 = vmatpush1.bf16.msra.mxu0 %v617
      %676 = vmatprep.subr.bf16.mxu0 0
      %677 = vmatpush2.bf16.msra.mxu0 0
      %678 = vmatprep.subr.bf16.mxu0 0
      %679 = vmatpush2.bf16.msra.mxu0 0
      %680 = vmatprep.subr.bf16.mxu0 0
      %681 = vmatpush2.bf16.msra.mxu0 0
      %682 = vmatprep.subr.bf16.mxu0 0
      %683 = vmatpush2.bf16.msra.mxu0 0
      %684 = vmatprep.subr.bf16.mxu0 0
      %685 = vmatpush2.bf16.msra.mxu0 0
      %686 = vmatprep.subr.bf16.mxu0 0
      %687 = vmatpush2.bf16.msra.mxu0 0
      %688 = vmatprep.subr.bf16.mxu0 0
      %689 = vmatpush2.bf16.msra.mxu0 0
      %690 = vmatprep.subr.bf16.mxu0 0
      %691 = vmatpush2.bf16.msra.mxu0 0
      %692 = vmatprep.mubr.bf16.mxu0 0
      %693 = vmatmul.mubr.bf16.gmra.mxu0 %v608
      %v694 = vpop.f32.mrf.mxu0
      %v695 = vadd.f32 0.0, %v694
      %v696 = vpop.f32.mrf.mxu0
      %v697 = vpop.f32.mrf.mxu0
      %v698 = vpop.f32.mrf.mxu0
      %699 = vdwg.mxu0
      %v700 = vadd.f32 %v593, %v654
      %v701 = vadd.f32 %v594, %v656
      %v702 = vadd.f32 %v595, %v695
      %s703 = scalar_lea.vmem %s1, 20
      %v704 = vld [vmem:[%s703] sm:$0xf]
      %705 = vrot.lane.b32.xlu0 %v182, 108
      %v706 = vpop.permute.xlu0 %705
      %707 = vrot.lane.b32.xlu0 %v183, 108
      %v708 = vpop.permute.xlu0 %707
      %709 = vrot.lane.b32.xlu0 %v184, 108
      %v710 = vpop.permute.xlu0 %709
      %vm711 = vcmask 883712
      %v712 = vsel %vm711, %v706, %v708
      %v713 = vsel %vm711, %v708, %v710
      %v715 = vsel %vm194, %v704, 0
      %v718 = vsel %vm198, %v712, 0
      %v721 = vsel %vm198, %v713, 0
      %v724 = vsel %vm198, %v710, 0
      %726 = vmatprep.subr.bf16.mxu0 0
      %727 = vmatpush1.bf16.msra.mxu0 0
      %728 = vmatprep.subr.bf16.mxu0 0
      %729 = vmatpush1.bf16.msra.mxu0 0
      %730 = vmatprep.subr.bf16.mxu0 0
      %731 = vmatpush1.bf16.msra.mxu0 0
      %732 = vmatprep.subr.bf16.mxu0 0
      %733 = vmatpush1.bf16.msra.mxu0 0
      %734 = vmatprep.subr.bf16.mxu0 0
      %735 = vmatpush1.bf16.msra.mxu0 0
      %736 = vmatprep.subr.bf16.mxu0 0
      %737 = vmatpush1.bf16.msra.mxu0 0
      %738 = vmatprep.subr.bf16.mxu0 0
      %739 = vmatpush1.bf16.msra.mxu0 0
      %740 = vmatprep.subr.bf16.mxu0 %v721
      %741 = vmatpush1.bf16.msra.mxu0 %v718
      %742 = vmatprep.subr.bf16.mxu0 0
      %743 = vmatpush2.bf16.msra.mxu0 0
      %744 = vmatprep.subr.bf16.mxu0 0
      %745 = vmatpush2.bf16.msra.mxu0 0
      %746 = vmatprep.subr.bf16.mxu0 0
      %747 = vmatpush2.bf16.msra.mxu0 0
      %748 = vmatprep.subr.bf16.mxu0 0
      %749 = vmatpush2.bf16.msra.mxu0 0
      %750 = vmatprep.subr.bf16.mxu0 0
      %751 = vmatpush2.bf16.msra.mxu0 0
      %752 = vmatprep.subr.bf16.mxu0 0
      %753 = vmatpush2.bf16.msra.mxu0 0
      %754 = vmatprep.subr.bf16.mxu0 0
      %755 = vmatpush2.bf16.msra.mxu0 0
      %756 = vmatprep.subr.bf16.mxu0 0
      %757 = vmatpush2.bf16.msra.mxu0 0
      %758 = vmatprep.mubr.bf16.mxu0 0
      %759 = vmatmul.mubr.bf16.gmra.mxu0 %v715
      %v760 = vpop.f32.mrf.mxu0
      %v761 = vadd.f32 0.0, %v760
      %v762 = vpop.f32.mrf.mxu0
      %v763 = vadd.f32 0.0, %v762
      %v764 = vpop.f32.mrf.mxu0
      %v765 = vpop.f32.mrf.mxu0
      %766 = vdwg.mxu0
      %767 = vmatprep.subr.bf16.mxu0 0
      %768 = vmatpush1.bf16.msra.mxu0 0
      %769 = vmatprep.subr.bf16.mxu0 0
      %770 = vmatpush1.bf16.msra.mxu0 0
      %771 = vmatprep.subr.bf16.mxu0 0
      %772 = vmatpush1.bf16.msra.mxu0 0
      %773 = vmatprep.subr.bf16.mxu0 0
      %774 = vmatpush1.bf16.msra.mxu0 0
      %775 = vmatprep.subr.bf16.mxu0 0
      %776 = vmatpush1.bf16.msra.mxu0 0
      %777 = vmatprep.subr.bf16.mxu0 0
      %778 = vmatpush1.bf16.msra.mxu0 0
      %779 = vmatprep.subr.bf16.mxu0 0
      %780 = vmatpush1.bf16.msra.mxu0 0
      %781 = vmatprep.subr.bf16.mxu0 0
      %782 = vmatpush1.bf16.msra.mxu0 %v724
      %783 = vmatprep.subr.bf16.mxu0 0
      %784 = vmatpush2.bf16.msra.mxu0 0
      %785 = vmatprep.subr.bf16.mxu0 0
      %786 = vmatpush2.bf16.msra.mxu0 0
      %787 = vmatprep.subr.bf16.mxu0 0
      %788 = vmatpush2.bf16.msra.mxu0 0
      %789 = vmatprep.subr.bf16.mxu0 0
      %790 = vmatpush2.bf16.msra.mxu0 0
      %791 = vmatprep.subr.bf16.mxu0 0
      %792 = vmatpush2.bf16.msra.mxu0 0
      %793 = vmatprep.subr.bf16.mxu0 0
      %794 = vmatpush2.bf16.msra.mxu0 0
      %795 = vmatprep.subr.bf16.mxu0 0
      %796 = vmatpush2.bf16.msra.mxu0 0
      %797 = vmatprep.subr.bf16.mxu0 0
      %798 = vmatpush2.bf16.msra.mxu0 0
      %799 = vmatprep.mubr.bf16.mxu0 0
      %800 = vmatmul.mubr.bf16.gmra.mxu0 %v715
      %v801 = vpop.f32.mrf.mxu0
      %v802 = vadd.f32 0.0, %v801
      %v803 = vpop.f32.mrf.mxu0
      %v804 = vpop.f32.mrf.mxu0
      %v805 = vpop.f32.mrf.mxu0
      %806 = vdwg.mxu0
      %v807 = vadd.f32 %v700, %v761
      %v808 = vadd.f32 %v701, %v763
      %v809 = vadd.f32 %v702, %v802
      %s810 = scalar_lea.vmem %s1, 24
      %v811 = vld [vmem:[%s810] sm:$0xf]
      %812 = vrot.lane.b32.xlu0 %v182, 92
      %v813 = vpop.permute.xlu0 %812
      %814 = vrot.lane.b32.xlu0 %v183, 92
      %v815 = vpop.permute.xlu0 %814
      %816 = vrot.lane.b32.xlu0 %v184, 92
      %v817 = vpop.permute.xlu0 %816
      %vm818 = vcmask 752640
      %v819 = vsel %vm818, %v813, %v815
      %v820 = vsel %vm818, %v815, %v817
      %v822 = vsel %vm194, %v811, 0
      %v825 = vsel %vm198, %v819, 0
      %v828 = vsel %vm198, %v820, 0
      %v831 = vsel %vm198, %v817, 0
      %833 = vmatprep.subr.bf16.mxu0 0
      %834 = vmatpush1.bf16.msra.mxu0 0
      %835 = vmatprep.subr.bf16.mxu0 0
      %836 = vmatpush1.bf16.msra.mxu0 0
      %837 = vmatprep.subr.bf16.mxu0 0
      %838 = vmatpush1.bf16.msra.mxu0 0
      %839 = vmatprep.subr.bf16.mxu0 0
      %840 = vmatpush1.bf16.msra.mxu0 0
      %841 = vmatprep.subr.bf16.mxu0 0
      %842 = vmatpush1.bf16.msra.mxu0 0
      %843 = vmatprep.subr.bf16.mxu0 0
      %844 = vmatpush1.bf16.msra.mxu0 0
      %845 = vmatprep.subr.bf16.mxu0 0
      %846 = vmatpush1.bf16.msra.mxu0 0
      %847 = vmatprep.subr.bf16.mxu0 %v828
      %848 = vmatpush1.bf16.msra.mxu0 %v825
      %849 = vmatprep.subr.bf16.mxu0 0
      %850 = vmatpush2.bf16.msra.mxu0 0
      %851 = vmatprep.subr.bf16.mxu0 0
      %852 = vmatpush2.bf16.msra.mxu0 0
      %853 = vmatprep.subr.bf16.mxu0 0
      %854 = vmatpush2.bf16.msra.mxu0 0
      %855 = vmatprep.subr.bf16.mxu0 0
      %856 = vmatpush2.bf16.msra.mxu0 0
      %857 = vmatprep.subr.bf16.mxu0 0
      %858 = vmatpush2.bf16.msra.mxu0 0
      %859 = vmatprep.subr.bf16.mxu0 0
      %860 = vmatpush2.bf16.msra.mxu0 0
      %861 = vmatprep.subr.bf16.mxu0 0
      %862 = vmatpush2.bf16.msra.mxu0 0
      %863 = vmatprep.subr.bf16.mxu0 0
      %864 = vmatpush2.bf16.msra.mxu0 0
      %865 = vmatprep.mubr.bf16.mxu0 0
      %866 = vmatmul.mubr.bf16.gmra.mxu0 %v822
      %v867 = vpop.f32.mrf.mxu0
      %v868 = vadd.f32 0.0, %v867
      %v869 = vpop.f32.mrf.mxu0
      %v870 = vadd.f32 0.0, %v869
      %v871 = vpop.f32.mrf.mxu0
      %v872 = vpop.f32.mrf.mxu0
      %873 = vdwg.mxu0
      %874 = vmatprep.subr.bf16.mxu0 0
      %875 = vmatpush1.bf16.msra.mxu0 0
      %876 = vmatprep.subr.bf16.mxu0 0
      %877 = vmatpush1.bf16.msra.mxu0 0
      %878 = vmatprep.subr.bf16.mxu0 0
      %879 = vmatpush1.bf16.msra.mxu0 0
      %880 = vmatprep.subr.bf16.mxu0 0
      %881 = vmatpush1.bf16.msra.mxu0 0
      %882 = vmatprep.subr.bf16.mxu0 0
      %883 = vmatpush1.bf16.msra.mxu0 0
      %884 = vmatprep.subr.bf16.mxu0 0
      %885 = vmatpush1.bf16.msra.mxu0 0
      %886 = vmatprep.subr.bf16.mxu0 0
      %887 = vmatpush1.bf16.msra.mxu0 0
      %888 = vmatprep.subr.bf16.mxu0 0
      %889 = vmatpush1.bf16.msra.mxu0 %v831
      %890 = vmatprep.subr.bf16.mxu0 0
      %891 = vmatpush2.bf16.msra.mxu0 0
      %892 = vmatprep.subr.bf16.mxu0 0
      %893 = vmatpush2.bf16.msra.mxu0 0
      %894 = vmatprep.subr.bf16.mxu0 0
      %895 = vmatpush2.bf16.msra.mxu0 0
      %896 = vmatprep.subr.bf16.mxu0 0
      %897 = vmatpush2.bf16.msra.mxu0 0
      %898 = vmatprep.subr.bf16.mxu0 0
      %899 = vmatpush2.bf16.msra.mxu0 0
      %900 = vmatprep.subr.bf16.mxu0 0
      %901 = vmatpush2.bf16.msra.mxu0 0
      %902 = vmatprep.subr.bf16.mxu0 0
      %903 = vmatpush2.bf16.msra.mxu0 0
      %904 = vmatprep.subr.bf16.mxu0 0
      %905 = vmatpush2.bf16.msra.mxu0 0
      %906 = vmatprep.mubr.bf16.mxu0 0
      %907 = vmatmul.mubr.bf16.gmra.mxu0 %v822
      %v908 = vpop.f32.mrf.mxu0
      %v909 = vadd.f32 0.0, %v908
      %v910 = vpop.f32.mrf.mxu0
      %v911 = vpop.f32.mrf.mxu0
      %v912 = vpop.f32.mrf.mxu0
      %913 = vdwg.mxu0
      %v914 = vadd.f32 %v807, %v868
      %v915 = vadd.f32 %v808, %v870
      %v916 = vadd.f32 %v809, %v909
      %s917 = scalar_lea.vmem %s1, 28
      %v918 = vld [vmem:[%s917] sm:$0xf]
      %919 = vrot.lane.b32.xlu0 %v182, 91
      %v920 = vpop.permute.xlu0 %919
      %921 = vrot.lane.b32.xlu0 %v183, 91
      %v922 = vpop.permute.xlu0 %921
      %923 = vrot.lane.b32.xlu0 %v184, 91
      %v924 = vpop.permute.xlu0 %923
      %vm925 = vcmask 744448
      %v926 = vsel %vm925, %v920, %v922
      %v927 = vsel %vm925, %v922, %v924
      %v929 = vsel %vm194, %v918, 0
      %v932 = vsel %vm198, %v926, 0
      %v935 = vsel %vm198, %v927, 0
      %v938 = vsel %vm198, %v924, 0
      %940 = vmatprep.subr.bf16.mxu0 0
      %941 = vmatpush1.bf16.msra.mxu0 0
      %942 = vmatprep.subr.bf16.mxu0 0
      %943 = vmatpush1.bf16.msra.mxu0 0
      %944 = vmatprep.subr.bf16.mxu0 0
      %945 = vmatpush1.bf16.msra.mxu0 0
      %946 = vmatprep.subr.bf16.mxu0 0
      %947 = vmatpush1.bf16.msra.mxu0 0
      %948 = vmatprep.subr.bf16.mxu0 0
      %949 = vmatpush1.bf16.msra.mxu0 0
      %950 = vmatprep.subr.bf16.mxu0 0
      %951 = vmatpush1.bf16.msra.mxu0 0
      %952 = vmatprep.subr.bf16.mxu0 0
      %953 = vmatpush1.bf16.msra.mxu0 0
      %954 = vmatprep.subr.bf16.mxu0 %v935
      %955 = vmatpush1.bf16.msra.mxu0 %v932
      %956 = vmatprep.subr.bf16.mxu0 0
      %957 = vmatpush2.bf16.msra.mxu0 0
      %958 = vmatprep.subr.bf16.mxu0 0
      %959 = vmatpush2.bf16.msra.mxu0 0
      %960 = vmatprep.subr.bf16.mxu0 0
      %961 = vmatpush2.bf16.msra.mxu0 0
      %962 = vmatprep.subr.bf16.mxu0 0
      %963 = vmatpush2.bf16.msra.mxu0 0
      %964 = vmatprep.subr.bf16.mxu0 0
      %965 = vmatpush2.bf16.msra.mxu0 0
      %966 = vmatprep.subr.bf16.mxu0 0
      %967 = vmatpush2.bf16.msra.mxu0 0
      %968 = vmatprep.subr.bf16.mxu0 0
      %969 = vmatpush2.bf16.msra.mxu0 0
      %970 = vmatprep.subr.bf16.mxu0 0
      %971 = vmatpush2.bf16.msra.mxu0 0
      %972 = vmatprep.mubr.bf16.mxu0 0
      %973 = vmatmul.mubr.bf16.gmra.mxu0 %v929
      %v974 = vpop.f32.mrf.mxu0
      %v975 = vadd.f32 0.0, %v974
      %v976 = vpop.f32.mrf.mxu0
      %v977 = vadd.f32 0.0, %v976
      %v978 = vpop.f32.mrf.mxu0
      %v979 = vpop.f32.mrf.mxu0
      %980 = vdwg.mxu0
      %981 = vmatprep.subr.bf16.mxu0 0
      %982 = vmatpush1.bf16.msra.mxu0 0
      %983 = vmatprep.subr.bf16.mxu0 0
      %984 = vmatpush1.bf16.msra.mxu0 0
      %985 = vmatprep.subr.bf16.mxu0 0
      %986 = vmatpush1.bf16.msra.mxu0 0
      %987 = vmatprep.subr.bf16.mxu0 0
      %988 = vmatpush1.bf16.msra.mxu0 0
      %989 = vmatprep.subr.bf16.mxu0 0
      %990 = vmatpush1.bf16.msra.mxu0 0
      %991 = vmatprep.subr.bf16.mxu0 0
      %992 = vmatpush1.bf16.msra.mxu0 0
      %993 = vmatprep.subr.bf16.mxu0 0
      %994 = vmatpush1.bf16.msra.mxu0 0
      %995 = vmatprep.subr.bf16.mxu0 0
      %996 = vmatpush1.bf16.msra.mxu0 %v938
      %997 = vmatprep.subr.bf16.mxu0 0
      %998 = vmatpush2.bf16.msra.mxu0 0
      %999 = vmatprep.subr.bf16.mxu0 0
      %1000 = vmatpush2.bf16.msra.mxu0 0
      %1001 = vmatprep.subr.bf16.mxu0 0
      %1002 = vmatpush2.bf16.msra.mxu0 0
      %1003 = vmatprep.subr.bf16.mxu0 0
      %1004 = vmatpush2.bf16.msra.mxu0 0
      %1005 = vmatprep.subr.bf16.mxu0 0
      %1006 = vmatpush2.bf16.msra.mxu0 0
      %1007 = vmatprep.subr.bf16.mxu0 0
      %1008 = vmatpush2.bf16.msra.mxu0 0
      %1009 = vmatprep.subr.bf16.mxu0 0
      %1010 = vmatpush2.bf16.msra.mxu0 0
      %1011 = vmatprep.subr.bf16.mxu0 0
      %1012 = vmatpush2.bf16.msra.mxu0 0
      %1013 = vmatprep.mubr.bf16.mxu0 0
      %1014 = vmatmul.mubr.bf16.gmra.mxu0 %v929
      %v1015 = vpop.f32.mrf.mxu0
      %v1016 = vadd.f32 0.0, %v1015
      %v1017 = vpop.f32.mrf.mxu0
      %v1018 = vpop.f32.mrf.mxu0
      %v1019 = vpop.f32.mrf.mxu0
      %1020 = vdwg.mxu0
      %v1021 = vadd.f32 %v914, %v975
      %v1022 = vadd.f32 %v915, %v977
      %v1023 = vadd.f32 %v916, %v1016
      %s1024 = scalar_lea.vmem %s1, 32
      %v1025 = vld [vmem:[%s1024] sm:$0xf]
      %1026 = vrot.lane.b32.xlu0 %v182, 90
      %v1027 = vpop.permute.xlu0 %1026
      %1028 = vrot.lane.b32.xlu0 %v183, 90
      %v1029 = vpop.permute.xlu0 %1028
      %1030 = vrot.lane.b32.xlu0 %v184, 90
      %v1031 = vpop.permute.xlu0 %1030
      %vm1032 = vcmask 736256
      %v1033 = vsel %vm1032, %v1027, %v1029
      %v1034 = vsel %vm1032, %v1029, %v1031
      %v1036 = vsel %vm194, %v1025, 0
      %v1039 = vsel %vm198, %v1033, 0
      %v1042 = vsel %vm198, %v1034, 0
      %v1045 = vsel %vm198, %v1031, 0
      %1047 = vmatprep.subr.bf16.mxu0 0
      %1048 = vmatpush1.bf16.msra.mxu0 0
      %1049 = vmatprep.subr.bf16.mxu0 0
      %1050 = vmatpush1.bf16.msra.mxu0 0
      %1051 = vmatprep.subr.bf16.mxu0 0
      %1052 = vmatpush1.bf16.msra.mxu0 0
      %1053 = vmatprep.subr.bf16.mxu0 0
      %1054 = vmatpush1.bf16.msra.mxu0 0
      %1055 = vmatprep.subr.bf16.mxu0 0
      %1056 = vmatpush1.bf16.msra.mxu0 0
      %1057 = vmatprep.subr.bf16.mxu0 0
      %1058 = vmatpush1.bf16.msra.mxu0 0
      %1059 = vmatprep.subr.bf16.mxu0 0
      %1060 = vmatpush1.bf16.msra.mxu0 0
      %1061 = vmatprep.subr.bf16.mxu0 %v1042
      %1062 = vmatpush1.bf16.msra.mxu0 %v1039
      %1063 = vmatprep.subr.bf16.mxu0 0
      %1064 = vmatpush2.bf16.msra.mxu0 0
      %1065 = vmatprep.subr.bf16.mxu0 0
      %1066 = vmatpush2.bf16.msra.mxu0 0
      %1067 = vmatprep.subr.bf16.mxu0 0
      %1068 = vmatpush2.bf16.msra.mxu0 0
      %1069 = vmatprep.subr.bf16.mxu0 0
      %1070 = vmatpush2.bf16.msra.mxu0 0
      %1071 = vmatprep.subr.bf16.mxu0 0
      %1072 = vmatpush2.bf16.msra.mxu0 0
      %1073 = vmatprep.subr.bf16.mxu0 0
      %1074 = vmatpush2.bf16.msra.mxu0 0
      %1075 = vmatprep.subr.bf16.mxu0 0
      %1076 = vmatpush2.bf16.msra.mxu0 0
      %1077 = vmatprep.subr.bf16.mxu0 0
      %1078 = vmatpush2.bf16.msra.mxu0 0
      %1079 = vmatprep.mubr.bf16.mxu0 0
      %1080 = vmatmul.mubr.bf16.gmra.mxu0 %v1036
      %v1081 = vpop.f32.mrf.mxu0
      %v1082 = vadd.f32 0.0, %v1081
      %v1083 = vpop.f32.mrf.mxu0
      %v1084 = vadd.f32 0.0, %v1083
      %v1085 = vpop.f32.mrf.mxu0
      %v1086 = vpop.f32.mrf.mxu0
      %1087 = vdwg.mxu0
      %1088 = vmatprep.subr.bf16.mxu0 0
      %1089 = vmatpush1.bf16.msra.mxu0 0
      %1090 = vmatprep.subr.bf16.mxu0 0
      %1091 = vmatpush1.bf16.msra.mxu0 0
      %1092 = vmatprep.subr.bf16.mxu0 0
      %1093 = vmatpush1.bf16.msra.mxu0 0
      %1094 = vmatprep.subr.bf16.mxu0 0
      %1095 = vmatpush1.bf16.msra.mxu0 0
      %1096 = vmatprep.subr.bf16.mxu0 0
      %1097 = vmatpush1.bf16.msra.mxu0 0
      %1098 = vmatprep.subr.bf16.mxu0 0
      %1099 = vmatpush1.bf16.msra.mxu0 0
      %1100 = vmatprep.subr.bf16.mxu0 0
      %1101 = vmatpush1.bf16.msra.mxu0 0
      %1102 = vmatprep.subr.bf16.mxu0 0
      %1103 = vmatpush1.bf16.msra.mxu0 %v1045
      %1104 = vmatprep.subr.bf16.mxu0 0
      %1105 = vmatpush2.bf16.msra.mxu0 0
      %1106 = vmatprep.subr.bf16.mxu0 0
      %1107 = vmatpush2.bf16.msra.mxu0 0
      %1108 = vmatprep.subr.bf16.mxu0 0
      %1109 = vmatpush2.bf16.msra.mxu0 0
      %1110 = vmatprep.subr.bf16.mxu0 0
      %1111 = vmatpush2.bf16.msra.mxu0 0
      %1112 = vmatprep.subr.bf16.mxu0 0
      %1113 = vmatpush2.bf16.msra.mxu0 0
      %1114 = vmatprep.subr.bf16.mxu0 0
      %1115 = vmatpush2.bf16.msra.mxu0 0
      %1116 = vmatprep.subr.bf16.mxu0 0
      %1117 = vmatpush2.bf16.msra.mxu0 0
      %1118 = vmatprep.subr.bf16.mxu0 0
      %1119 = vmatpush2.bf16.msra.mxu0 0
      %1120 = vmatprep.mubr.bf16.mxu0 0
      %1121 = vmatmul.mubr.bf16.gmra.mxu0 %v1036
      %v1122 = vpop.f32.mrf.mxu0
      %v1123 = vadd.f32 0.0, %v1122
      %v1124 = vpop.f32.mrf.mxu0
      %v1125 = vpop.f32.mrf.mxu0
      %v1126 = vpop.f32.mrf.mxu0
      %1127 = vdwg.mxu0
      %v1128 = vadd.f32 %v1021, %v1082
      %v1129 = vadd.f32 %v1022, %v1084
      %v1130 = vadd.f32 %v1023, %v1123
      %v1131 = vld [vmem:[%s2] sm:$0xff]
      %1133 = vset.pattern.permute.xlu0 0
      %1134 = vperm.xlu0 %1133, %v1131
      %v1135 = vpop.permute.xlu0 %1134
      %v1137 = vadd.f32 %v1128, %v1135
      %v1138 = vadd.f32 %v1129, %v1135
      %v1139 = vadd.f32 %v1130, %v1135
      %1140 = vst [vmem:[%s170] sm:$0xff] %v1137
      %1141 = vst [vmem:[%s170 + $0x8] sm:$0xff] %v1138
      %vm1142 = vcmask 261120
      %1143 = vst.msk [vmem:[%s170 + $0x10] sm:$0xff] %vm1142, %v1139
      %p1144 = scmp.lt.s32.totalorder %s14, 1
      %s1145 = scalar_select %p1144, %s14, 1
      %s1146 = smul.addr %s1145, 3
      %s1147 = smul.addr %s1146, 8
      %s1148 = scalar_lea.vmem %s3, %s1147
      // Predicated region
      $region33: #{complex_conv2d_wrapper.1} parent=31 // pred_check
        %p1149 = pneg %p100
      $region34: #{complex_conv2d_wrapper.1} parent=31 // pred_check_branch
        %1151 = sbr.rel (%p1149) target = $region36
      $region35: #{complex_conv2d_wrapper.1} parent=31 // pred_region
        _
      $region36: #{complex_conv2d_wrapper.1} parent=31 // pred_fallthru
        _
    $region32: #{complex_conv2d_wrapper.1} parent=5 // pred_fallthru
      _
    %p1152 = scmp.le.s32.totalorder 2, %s9
    // Predicated region
    $region37: #{complex_conv2d_wrapper.1} parent=5 // pred_check
      %p1153 = pneg %p1152
    $region38: #{complex_conv2d_wrapper.1} parent=5 // pred_check_branch
      %1155 = sbr.rel (%p1153) target = $region40
    $region39: #{complex_conv2d_wrapper.1} parent=5 // pred_region
      %s1156 = ssub.s32 %s9, 2
      // Predicated region
      $region41: #{complex_conv2d_wrapper.1} parent=39 // pred_check
        %p1157 = pneg %p106
      $region42: #{complex_conv2d_wrapper.1} parent=39 // pred_check_branch
        %1159 = sbr.rel (%p1157) target = $region44
      $region43: #{complex_conv2d_wrapper.1} parent=39 // pred_region
        %p1160 = scmp.lt.s32.totalorder %s15, 1
        %s1161 = scalar_select %p1160, %s15, 1
        %s1162 = smul.addr %s1161, 3
        %s1163 = smul.addr %s1162, 8
        %s1164 = scalar_lea.vmem %s3, %s1163
      $region44: #{complex_conv2d_wrapper.1} parent=39 // pred_fallthru
        _
    $region40: #{complex_conv2d_wrapper.1} parent=5 // pred_fallthru
      _
  $region6: #{complex_conv2d_wrapper.1} parent=0 // loop_footer
    %s13 = sadd.s32 1, %s9
  $region7: #{complex_conv2d_wrapper.1} parent=0 // loop_footer_branch
    %8 = sbr.rel target = $region3
  $region8: #{complex_conv2d_wrapper.1} parent=0 // loop_exit
    _

</llo_original>
